<compile_context>
chip_gen: v7x
topology: tpu7x:2x2x1
jax: 0.10.0
libtpu: 0.0.40
codegen_flags: <defaults>
</compile_context>

<pallas_src>
import jax
import jax.numpy as jnp
from jax.experimental import pallas as pl
from jax.experimental.pallas import tpu as pltpu


# ----------------------------- kernel ---------------------------------------

def _softplus(x):
    # matches torch.nn.functional.softplus (beta=1), numerically stable
    return jnp.logaddexp(x, 0.0)


def _mle_kernel(x_ref, w1_ref, b1_ref, w2m_ref, b2m_ref, w2v_ref, b2v_ref,
                tvar_ref, maxlv_ref, minlv_ref, out_ref):
    # layer 1 (input normalization already folded into w1/b1 wrapper-side)
    h = jnp.dot(x_ref[...], w1_ref[...], preferred_element_type=jnp.float32)
    h = jnp.maximum(h + b1_ref[...], 0.0)                    # ReLU, f32
    hc = h.astype(w2m_ref.dtype)                             # bf16 or f32

    # mean head (target de-normalization folded into w2m/b2m wrapper-side)
    mean = jnp.dot(hc, w2m_ref[...],
                   preferred_element_type=jnp.float32) + b2m_ref[...]

    # logvar head + soft bounding (all-f32 epilogue; EUP transcendentals)
    logvar = jnp.dot(hc, w2v_ref[...],
                     preferred_element_type=jnp.float32) + b2v_ref[...]
    max_lv = maxlv_ref[0]
    min_lv = minlv_ref[0]
    logvar = max_lv - _softplus(max_lv - logvar)
    logvar = min_lv + _softplus(logvar - min_lv)
    var = jnp.exp(logvar) * tvar_ref[...]                    # * target_std**2

    # single lane-denser output slab: [TILE_N, 2T] = [mean | var]
    out_ref[...] = jnp.concatenate([mean, var], axis=-1)


# ----------------------------- wrapper ---------------------------------------

def _round_up(a, b):
    return -(-a // b) * b


def _vmem_estimate(tile_n, d_in, hidden, t, mm_bytes):
    """Rough padded-VMEM footprint (double-buffered), for vmem_limit_bytes."""
    lane = lambda d: _round_up(max(d, 1), 128)
    sub = lambda d: _round_up(max(d, 1), 8)
    est = 0
    est += 2 * sub(tile_n) * lane(d_in) * mm_bytes            # x tile (x2 buf)
    est += 2 * sub(tile_n) * lane(2 * t) * 4                  # out tile (x2 buf)
    est += 2 * sub(d_in) * lane(hidden) * mm_bytes            # w1
    est += 2 * 2 * sub(hidden) * lane(t) * mm_bytes           # w2m, w2v
    est += 2 * sub(1) * (lane(hidden) + 3 * lane(t)) * 4      # b1, b2m, b2v, tvar
    est += sub(tile_n) * (lane(hidden) + 2 * lane(t) + lane(2 * t)) * 4  # live vals
    return est


def mle_regression_forward(x, params, *, use_bf16=False, max_tile_n=512):
    """x: [N, input_dim] float32. Returns (mean [N, T], var [N, T])."""
    n, d_in = x.shape
    t = params["target_mean"].shape[-1]
    hidden = params["w1"].shape[-1]

    # ---- wrapper-side constant folding (zero in-kernel cost) ----------------
    inv_std = 1.0 / params["input_std"]                       # [1, D_in]
    w1f = params["w1"] * inv_std.reshape(d_in, 1)             # fold /std
    b1f = params["b1"] - (params["input_mean"] * inv_std) @ params["w1"]
    w2, b2 = params["w2"], params["b2"]
    t_std, t_mean = params["target_std"], params["target_mean"]
    w2m = w2[:, :t] * t_std                                   # fold mean de-norm
    b2m = b2[:, :t] * t_std + t_mean
    w2v = w2[:, t:]
    b2v = b2[:, t:]
    tvar = t_std * t_std                                      # [1, T]

    mm_dtype = jnp.bfloat16 if use_bf16 else jnp.float32
    x_mm = x.astype(mm_dtype)
    w1f = w1f.astype(mm_dtype)
    w2m = w2m.astype(mm_dtype)
    w2v = w2v.astype(mm_dtype)
    # biases / tvar / bounds stay f32 (f32 epilogue everywhere; safe on v5e)

    # ---- batch tiling --------------------------------------------------------
    tile_n = min(max_tile_n, _round_up(n, 8))
    n_pad = _round_up(n, tile_n)
    if n_pad != n:
        x_mm = jnp.pad(x_mm, ((0, n_pad - n), (0, 0)))
    grid = (n_pad // tile_n,)

    mm_bytes = 2 if use_bf16 else 4
    vmem_limit = int(min(max(2 * _vmem_estimate(tile_n, d_in, hidden, t, mm_bytes),
                             16 * 1024 * 1024),
                         48 * 1024 * 1024))                   # < v7x 64 MiB VMEM

    in_bytes = sum(int(a.size) * a.dtype.itemsize
                   for a in (x_mm, w1f, b1f, w2m, b2m, w2v, b2v, tvar))
    cost = pl.CostEstimate(
        flops=2 * n_pad * (d_in * hidden + 2 * hidden * t),
        transcendentals=5 * n_pad * t,
        bytes_accessed=in_bytes + n_pad * 2 * t * 4,
    )

    full2d = lambda shape: pl.BlockSpec(shape, lambda i: (0, 0))  # grid-invariant
    smem = pl.BlockSpec(memory_space=pltpu.MemorySpace.SMEM)

    out = pl.pallas_call(
        _mle_kernel,
        out_shape=jax.ShapeDtypeStruct((n_pad, 2 * t), jnp.float32),
        grid=grid,
        in_specs=[
            pl.BlockSpec((tile_n, d_in), lambda i: (i, 0)),   # x  (pipelined)
            full2d((d_in, hidden)),                           # w1 (resident)
            full2d((1, hidden)),                              # b1
            full2d((hidden, t)),                              # w2_mean
            full2d((1, t)),                                   # b2_mean
            full2d((hidden, t)),                              # w2_logvar
            full2d((1, t)),                                   # b2_logvar
            full2d((1, t)),                                   # target_std**2
            smem,                                             # max_logvar [1]
            smem,                                             # min_logvar [1]
        ],
        out_specs=pl.BlockSpec((tile_n, 2 * t), lambda i: (i, 0)),
        compiler_params=pltpu.CompilerParams(
            dimension_semantics=("parallel",),
            vmem_limit_bytes=vmem_limit,
        ),
        cost_estimate=cost,
    )(x_mm, w1f, b1f, w2m, b2m, w2v, b2v, tvar,
      params["max_logvar"], params["min_logvar"])

    mean = out[:n, :t]
    var = out[:n, t:]
    return mean, var


# ----------------------------- params / reference ----------------------------

def init_params(key, input_dim, hidden_dim, target_dim):
    output_dim = 2 * target_dim
    k1, k2, _ = jax.random.split(key, 3)
    params = {
        "w1": (jax.random.normal(k1, (input_dim, hidden_dim), jnp.float32)
               * (1.0 / jnp.sqrt(input_dim))),
        "b1": jnp.zeros((1, hidden_dim), jnp.float32),
        "w2": (jax.random.normal(k2, (hidden_dim, output_dim), jnp.float32)
               * (1.0 / jnp.sqrt(hidden_dim))),
        "b2": jnp.zeros((1, output_dim), jnp.float32),
        # registered parameters
        "max_logvar": jnp.array([0.5], jnp.float32),
        "min_logvar": jnp.array([-10.0], jnp.float32),
        # registered buffers (non-trivial so the normalization path is exercised)
        "input_mean": 0.1 * jnp.arange(input_dim, dtype=jnp.float32)[None, :],
        "input_std": 1.0 + 0.05 * jnp.arange(input_dim, dtype=jnp.float32)[None, :],
        "target_mean": 0.2 * jnp.arange(target_dim, dtype=jnp.float32)[None, :],
        "target_std": 1.0 + 0.1 * jnp.arange(target_dim, dtype=jnp.float32)[None, :],
    }
    return params


def _reference_forward(x, p):
    """Pure-JAX (unfolded) reference mirroring the PyTorch module."""
    x_n = (x - p["input_mean"]) / p["input_std"]
    h = jnp.maximum(x_n @ p["w1"] + p["b1"], 0.0)
    out = h @ p["w2"] + p["b2"]
    t = p["target_mean"].shape[-1]
    mean_raw, logvar = out[:, :t], out[:, t:]
    max_lv, min_lv = p["max_logvar"][0], p["min_logvar"][0]
    logvar = max_lv - jnp.logaddexp(max_lv - logvar, 0.0)
    logvar = min_lv + jnp.logaddexp(logvar - min_lv, 0.0)
    mean = mean_raw * p["target_std"] + p["target_mean"]
    var = jnp.exp(logvar) * p["target_std"] ** 2
    return mean, var


# ----------------------------- demo / check ----------------------------------

if __name__ == "__main__":
    key = jax.random.PRNGKey(0)
    k_param, k_x1, k_x2 = jax.random.split(key, 3)

    N, INPUT_DIM, HIDDEN_DIM, TARGET_DIM = 8, 16, 32, 4
    params = init_params(k_param, INPUT_DIM, HIDDEN_DIM, TARGET_DIM)

    # --- small batch, f32 path (single grid step) ---
    x = jax.random.normal(k_x1, (N, INPUT_DIM), jnp.float32)
    mean, var = mle_regression_forward(x, params)
    jax.block_until_ready((mean, var))
    ref_mean, ref_var = _reference_forward(x, params)
    assert mean.shape == (N, TARGET_DIM) and var.shape == (N, TARGET_DIM)
    assert jnp.allclose(mean, ref_mean, atol=1e-4, rtol=1e-4)
    assert jnp.allclose(var, ref_var, atol=1e-4, rtol=1e-4)
    assert bool(jnp.all(var > 0.0))

    # --- larger, non-multiple-of-tile batch: exercises the pipelined grid ---
    N2 = 1000
    x2 = jax.random.normal(k_x2, (N2, INPUT_DIM), jnp.float32)
    m2, v2 = mle_regression_forward(x2, params)
    jax.block_until_ready((m2, v2))
    rm2, rv2 = _reference_forward(x2, params)
    assert m2.shape == (N2, TARGET_DIM) and v2.shape == (N2, TARGET_DIM)
    assert jnp.allclose(m2, rm2, atol=1e-4, rtol=1e-4)
    assert jnp.allclose(v2, rv2, atol=1e-4, rtol=1e-4)

    # --- bf16 matmul inputs, f32 accumulate/epilogue (bandwidth optimization) ---
    m3, v3 = mle_regression_forward(x2, params, use_bf16=True)
    jax.block_until_ready((m3, v3))
    assert bool(jnp.all(jnp.isfinite(m3))) and bool(jnp.all(v3 > 0.0))
    assert jnp.allclose(m3, rm2, atol=0.25, rtol=0.25)
    assert jnp.allclose(v3, rv2, atol=0.25, rtol=0.25)

    print("KERNEL_OK")
</pallas_src>

<mosaic_0001>
module attributes {stable_mosaic.version = 11 : i64} {
  func.func @_mle_kernel(%arg0: i32, %arg1: memref<8x16xf32, #tpu.memory_space<vmem>>, %arg2: memref<16x32xf32, #tpu.memory_space<vmem>>, %arg3: memref<1x32xf32, #tpu.memory_space<vmem>>, %arg4: memref<32x4xf32, #tpu.memory_space<vmem>>, %arg5: memref<1x4xf32, #tpu.memory_space<vmem>>, %arg6: memref<32x4xf32, #tpu.memory_space<vmem>>, %arg7: memref<1x4xf32, #tpu.memory_space<vmem>>, %arg8: memref<1x4xf32, #tpu.memory_space<vmem>>, %arg9: memref<1xf32, #tpu.memory_space<smem>>, %arg10: memref<1xf32, #tpu.memory_space<smem>>, %arg11: memref<8x8xf32, #tpu.memory_space<vmem>>) attributes {dimension_semantics = [#tpu.dimension_semantics<parallel>], iteration_bounds = array<i64: 1>, scalar_prefetch = 0 : i64, scratch_operands = 0 : i64, tpu.core_type = #tpu.core_type<tc>, window_params = [{transform_indices = @transform_0, window_bounds = array<i64: 8, 16>}, {pipeline_mode = #tpu.pipeline_mode<synchronous>, transform_indices = @transform_1, window_bounds = array<i64: 16, 32>}, {pipeline_mode = #tpu.pipeline_mode<synchronous>, transform_indices = @transform_2, window_bounds = array<i64: 1, 32>}, {pipeline_mode = #tpu.pipeline_mode<synchronous>, transform_indices = @transform_3, window_bounds = array<i64: 32, 4>}, {pipeline_mode = #tpu.pipeline_mode<synchronous>, transform_indices = @transform_4, window_bounds = array<i64: 1, 4>}, {pipeline_mode = #tpu.pipeline_mode<synchronous>, transform_indices = @transform_5, window_bounds = array<i64: 32, 4>}, {pipeline_mode = #tpu.pipeline_mode<synchronous>, transform_indices = @transform_6, window_bounds = array<i64: 1, 4>}, {pipeline_mode = #tpu.pipeline_mode<synchronous>, transform_indices = @transform_7, window_bounds = array<i64: 1, 4>}, {transform_indices = @transform_8, window_bounds = array<i64: 1>}, {transform_indices = @transform_9, window_bounds = array<i64: 1>}, {transform_indices = @transform_10, window_bounds = array<i64: 8, 8>}]} {
    %c0 = arith.constant 0 : index
    %c0_0 = arith.constant 0 : index
    %0 = vector.load %arg1[%c0, %c0_0] : memref<8x16xf32, #tpu.memory_space<vmem>>, vector<8x16xf32>
    %c0_1 = arith.constant 0 : index
    %c0_2 = arith.constant 0 : index
    %1 = vector.load %arg2[%c0_1, %c0_2] : memref<16x32xf32, #tpu.memory_space<vmem>>, vector<16x32xf32>
    %cst = arith.constant dense<0.000000e+00> : vector<8x32xf32>
    %2 = tpu.matmul %0, %1, %cst {dimension_numbers = #tpu.dot_dimension_numbers<[1], [0], [0], [1], [0, 0, 1, 1], [], []>} : vector<8x16xf32>, vector<16x32xf32>, vector<8x32xf32> -> vector<8x32xf32>
    %c0_3 = arith.constant 0 : index
    %c0_4 = arith.constant 0 : index
    %3 = vector.load %arg3[%c0_3, %c0_4] : memref<1x32xf32, #tpu.memory_space<vmem>>, vector<1x32xf32>
    %4 = vector.broadcast %3 : vector<1x32xf32> to vector<8x32xf32>
    %5 = arith.addf %2, %4 : vector<8x32xf32>
    %cst_5 = arith.constant 0.000000e+00 : f32
    %6 = vector.broadcast %cst_5 : f32 to vector<8x32xf32>
    %7 = arith.maximumf %5, %6 : vector<8x32xf32>
    %c0_6 = arith.constant 0 : index
    %c0_7 = arith.constant 0 : index
    %8 = vector.load %arg4[%c0_6, %c0_7] : memref<32x4xf32, #tpu.memory_space<vmem>>, vector<32x4xf32>
    %cst_8 = arith.constant dense<0.000000e+00> : vector<8x4xf32>
    %9 = tpu.matmul %7, %8, %cst_8 {dimension_numbers = #tpu.dot_dimension_numbers<[1], [0], [0], [1], [0, 0, 1, 1], [], []>} : vector<8x32xf32>, vector<32x4xf32>, vector<8x4xf32> -> vector<8x4xf32>
    %c0_9 = arith.constant 0 : index
    %c0_10 = arith.constant 0 : index
    %10 = vector.load %arg5[%c0_9, %c0_10] : memref<1x4xf32, #tpu.memory_space<vmem>>, vector<1x4xf32>
    %11 = vector.broadcast %10 : vector<1x4xf32> to vector<8x4xf32>
    %12 = arith.addf %9, %11 : vector<8x4xf32>
    %c0_11 = arith.constant 0 : index
    %c0_12 = arith.constant 0 : index
    %13 = vector.load %arg6[%c0_11, %c0_12] : memref<32x4xf32, #tpu.memory_space<vmem>>, vector<32x4xf32>
    %cst_13 = arith.constant dense<0.000000e+00> : vector<8x4xf32>
    %14 = tpu.matmul %7, %13, %cst_13 {dimension_numbers = #tpu.dot_dimension_numbers<[1], [0], [0], [1], [0, 0, 1, 1], [], []>} : vector<8x32xf32>, vector<32x4xf32>, vector<8x4xf32> -> vector<8x4xf32>
    %c0_14 = arith.constant 0 : index
    %c0_15 = arith.constant 0 : index
    %15 = vector.load %arg7[%c0_14, %c0_15] : memref<1x4xf32, #tpu.memory_space<vmem>>, vector<1x4xf32>
    %16 = vector.broadcast %15 : vector<1x4xf32> to vector<8x4xf32>
    %17 = arith.addf %14, %16 : vector<8x4xf32>
    %c0_16 = arith.constant 0 : index
    %18 = memref.load %arg9[%c0_16] : memref<1xf32, #tpu.memory_space<smem>>
    %c0_17 = arith.constant 0 : index
    %19 = memref.load %arg10[%c0_17] : memref<1xf32, #tpu.memory_space<smem>>
    %20 = vector.broadcast %18 : f32 to vector<8x4xf32>
    %21 = arith.subf %20, %17 : vector<8x4xf32>
    %cst_18 = arith.constant 0.000000e+00 : f32
    %22 = vector.broadcast %cst_18 : f32 to vector<8x4xf32>
    %23 = arith.maximumf %21, %22 : vector<8x4xf32>
    %24 = vector.broadcast %cst_18 : f32 to vector<8x4xf32>
    %25 = arith.subf %21, %24 : vector<8x4xf32>
    %26 = arith.cmpf one, %25, %25 : vector<8x4xf32>
    %27 = vector.broadcast %cst_18 : f32 to vector<8x4xf32>
    %28 = arith.addf %21, %27 : vector<8x4xf32>
    %29 = math.absf %25 : vector<8x4xf32>
    %cst_19 = arith.constant 0.000000e+00 : f32
    %30 = vector.broadcast %cst_19 : f32 to vector<8x4xf32>
    %31 = arith.subf %30, %29 : vector<8x4xf32>
    %32 = math.exp %31 : vector<8x4xf32>
    %33 = math.log1p %32 : vector<8x4xf32>
    %34 = arith.addf %23, %33 : vector<8x4xf32>
    %35 = arith.select %26, %28, %34 : vector<8x4xi1>, vector<8x4xf32>
    %36 = vector.broadcast %18 : f32 to vector<8x4xf32>
    %37 = arith.subf %36, %35 : vector<8x4xf32>
    %38 = vector.broadcast %19 : f32 to vector<8x4xf32>
    %39 = arith.subf %37, %38 : vector<8x4xf32>
    %cst_20 = arith.constant 0.000000e+00 : f32
    %40 = vector.broadcast %cst_20 : f32 to vector<8x4xf32>
    %41 = arith.maximumf %39, %40 : vector<8x4xf32>
    %42 = vector.broadcast %cst_20 : f32 to vector<8x4xf32>
    %43 = arith.subf %39, %42 : vector<8x4xf32>
    %44 = arith.cmpf one, %43, %43 : vector<8x4xf32>
    %45 = vector.broadcast %cst_20 : f32 to vector<8x4xf32>
    %46 = arith.addf %39, %45 : vector<8x4xf32>
    %47 = math.absf %43 : vector<8x4xf32>
    %cst_21 = arith.constant 0.000000e+00 : f32
    %48 = vector.broadcast %cst_21 : f32 to vector<8x4xf32>
    %49 = arith.subf %48, %47 : vector<8x4xf32>
    %50 = math.exp %49 : vector<8x4xf32>
    %51 = math.log1p %50 : vector<8x4xf32>
    %52 = arith.addf %41, %51 : vector<8x4xf32>
    %53 = arith.select %44, %46, %52 : vector<8x4xi1>, vector<8x4xf32>
    %54 = vector.broadcast %19 : f32 to vector<8x4xf32>
    %55 = arith.addf %54, %53 : vector<8x4xf32>
    %56 = math.exp %55 : vector<8x4xf32>
    %c0_22 = arith.constant 0 : index
    %c0_23 = arith.constant 0 : index
    %57 = vector.load %arg8[%c0_22, %c0_23] : memref<1x4xf32, #tpu.memory_space<vmem>>, vector<1x4xf32>
    %58 = vector.broadcast %57 : vector<1x4xf32> to vector<8x4xf32>
    %59 = arith.mulf %56, %58 : vector<8x4xf32>
    %60 = tpu.concatenate %12, %59 in 1 : vector<8x4xf32>, vector<8x4xf32> -> vector<8x8xf32>
    %c0_24 = arith.constant 0 : index
    %c0_25 = arith.constant 0 : index
    %61 = vector.load %arg11[%c0_24, %c0_25] : memref<8x8xf32, #tpu.memory_space<vmem>>, vector<8x8xf32>
    tpu.vector_store %arg11[%c0_24, %c0_25], %60 {strides = array<i32>} : memref<8x8xf32, #tpu.memory_space<vmem>>, vector<8x8xf32>,
    return
  }
  func.func @transform_0(%arg0: i32) -> (i32, i32) {
    %c0_i32 = arith.constant 0 : i32
    %c0_i32_0 = arith.constant 0 : i32
    return %arg0, %c0_i32 : i32, i32
  }
  func.func @transform_1(%arg0: i32) -> (i32, i32) {
    %c0_i32 = arith.constant 0 : i32
    %c0_i32_0 = arith.constant 0 : i32
    %c0_i32_1 = arith.constant 0 : i32
    return %c0_i32, %c0_i32_0 : i32, i32
  }
  func.func @transform_2(%arg0: i32) -> (i32, i32) {
    %c0_i32 = arith.constant 0 : i32
    %c0_i32_0 = arith.constant 0 : i32
    %c0_i32_1 = arith.constant 0 : i32
    return %c0_i32, %c0_i32_0 : i32, i32
  }
  func.func @transform_3(%arg0: i32) -> (i32, i32) {
    %c0_i32 = arith.constant 0 : i32
    %c0_i32_0 = arith.constant 0 : i32
    %c0_i32_1 = arith.constant 0 : i32
    return %c0_i32, %c0_i32_0 : i32, i32
  }
  func.func @transform_4(%arg0: i32) -> (i32, i32) {
    %c0_i32 = arith.constant 0 : i32
    %c0_i32_0 = arith.constant 0 : i32
    %c0_i32_1 = arith.constant 0 : i32
    return %c0_i32, %c0_i32_0 : i32, i32
  }
  func.func @transform_5(%arg0: i32) -> (i32, i32) {
    %c0_i32 = arith.constant 0 : i32
    %c0_i32_0 = arith.constant 0 : i32
    %c0_i32_1 = arith.constant 0 : i32
    return %c0_i32, %c0_i32_0 : i32, i32
  }
  func.func @transform_6(%arg0: i32) -> (i32, i32) {
    %c0_i32 = arith.constant 0 : i32
    %c0_i32_0 = arith.constant 0 : i32
    %c0_i32_1 = arith.constant 0 : i32
    return %c0_i32, %c0_i32_0 : i32, i32
  }
  func.func @transform_7(%arg0: i32) -> (i32, i32) {
    %c0_i32 = arith.constant 0 : i32
    %c0_i32_0 = arith.constant 0 : i32
    %c0_i32_1 = arith.constant 0 : i32
    return %c0_i32, %c0_i32_0 : i32, i32
  }
  func.func @transform_8(%arg0: i32) -> i32 {
    %c0_i32 = arith.constant 0 : i32
    %c0_i32_0 = arith.constant 0 : i32
    return %c0_i32 : i32
  }
  func.func @transform_9(%arg0: i32) -> i32 {
    %c0_i32 = arith.constant 0 : i32
    %c0_i32_0 = arith.constant 0 : i32
    return %c0_i32 : i32
  }
  func.func @transform_10(%arg0: i32) -> (i32, i32) {
    %c0_i32 = arith.constant 0 : i32
    %c0_i32_0 = arith.constant 0 : i32
    return %arg0, %c0_i32 : i32, i32
  }
}

</mosaic_0001>

<llo_original>
// kernel: tpu_custom_call.1
$region0: #{tpu_custom_call.1}
  #allocation0 [shape = 'u32[]', space=smem, size = 0x4, offset = 0x4, fixed_abs, tag = 'smem constant byte address 0x4 - core index']
  #allocation1 [shape = 'u32[144,128]{1,0:T(1,128)}', space=vmem, size = 0x12000, scoped, tag = 'internal scratch']
  #allocation2 [shape = 'f32[1]{0:T(128)S(6)}', space=smem, size = 0x200, scoped, tag = 'scoped memory for tpu_custom_call.1']
  #allocation3 [shape = 'f32[1]{0:T(128)S(6)}', space=smem, size = 0x200, scoped, tag = 'scoped memory for tpu_custom_call.1']
  %s0 = inlined_call_operand.vmem [shape: f32[8,16], index: 0, kind: input, shape index: {}]
  %s1 = inlined_call_operand.vmem [shape: f32[16,32], index: 1, kind: input, shape index: {}]
  %s2 = inlined_call_operand.vmem [shape: f32[1,32], index: 2, kind: input, shape index: {}]
  %s3 = inlined_call_operand.vmem [shape: f32[32,4], index: 3, kind: input, shape index: {}]
  %s4 = inlined_call_operand.vmem [shape: f32[1,4], index: 4, kind: input, shape index: {}]
  %s5 = inlined_call_operand.vmem [shape: f32[32,4], index: 5, kind: input, shape index: {}]
  %s6 = inlined_call_operand.vmem [shape: f32[1,4], index: 6, kind: input, shape index: {}]
  %s7 = inlined_call_operand.vmem [shape: f32[1,4], index: 7, kind: input, shape index: {}]
  %s8 = inlined_call_operand.<no memory space> [shape: f32[1], index: 8, kind: input, shape index: {}]
  %s9 = inlined_call_operand.<no memory space> [shape: f32[1], index: 9, kind: input, shape index: {}]
  %s10 = inlined_call_operand.hbm [shape: f32[8,8], index: 10, kind: output, shape index: {}]
  %s11 = sld [smem:[#allocation0]]
  $region50: #{tpu_custom_call.1} parent=0
    _
  %s13 = ssub.s32 1, %s11
  %s14 = scalar_select 0, %s13, %s11
  %15 = sst [smem:[#allocation2]] %s8
  %16 = sst [smem:[#allocation3]] %s9
  $region1: #{tpu_custom_call.1} parent=0
    #allocation4 [shape = 'u8[4096]{0}', space=vmem, size = 0x1000, scoped, tag = 'output window, operand 0, single buffered']
    #allocation5 [shape = 's32[1]{0}', space=sflag, size = 0x4, scoped, tag = 'scoped memory for tpu_custom_call.1']
    %17 = vsyncpa [#allocation5], 0
    // Predicated region
    $region2: #{tpu_custom_call.1} parent=1 // pred_check
      _
    $region3: #{tpu_custom_call.1} parent=1 // pred_check_branch
      %19 = sbr.rel (0) target = $region5
    $region4: #{tpu_custom_call.1} parent=1 // pred_region
      _
    $region5: #{tpu_custom_call.1} parent=1 // pred_fallthru
      _
    // Predicated region
    $region6: #{tpu_custom_call.1} parent=1 // pred_check
      _
    $region7: #{tpu_custom_call.1} parent=1 // pred_check_branch
      %21 = sbr.rel (0) target = $region9
    $region8: #{tpu_custom_call.1} parent=1 // pred_region
      _
    $region9: #{tpu_custom_call.1} parent=1 // pred_fallthru
      _
    // Predicated region
    $region10: #{tpu_custom_call.1} parent=1 // pred_check
      _
    $region11: #{tpu_custom_call.1} parent=1 // pred_check_branch
      %23 = sbr.rel (0) target = $region13
    $region12: #{tpu_custom_call.1} parent=1 // pred_region
      _
    $region13: #{tpu_custom_call.1} parent=1 // pred_fallthru
      _
    // Predicated region
    $region14: #{tpu_custom_call.1} parent=1 // pred_check
      _
    $region15: #{tpu_custom_call.1} parent=1 // pred_check_branch
      %25 = sbr.rel (0) target = $region17
    $region16: #{tpu_custom_call.1} parent=1 // pred_region
      _
    $region17: #{tpu_custom_call.1} parent=1 // pred_fallthru
      _
    // Predicated region
    $region18: #{tpu_custom_call.1} parent=1 // pred_check
      _
    $region19: #{tpu_custom_call.1} parent=1 // pred_check_branch
      %27 = sbr.rel (0) target = $region21
    $region20: #{tpu_custom_call.1} parent=1 // pred_region
      _
    $region21: #{tpu_custom_call.1} parent=1 // pred_fallthru
      _
    // Predicated region
    $region22: #{tpu_custom_call.1} parent=1 // pred_check
      _
    $region23: #{tpu_custom_call.1} parent=1 // pred_check_branch
      %29 = sbr.rel (0) target = $region25
    $region24: #{tpu_custom_call.1} parent=1 // pred_region
      _
    $region25: #{tpu_custom_call.1} parent=1 // pred_fallthru
      _
    // Predicated region
    $region26: #{tpu_custom_call.1} parent=1 // pred_check
      _
    $region27: #{tpu_custom_call.1} parent=1 // pred_check_branch
      %31 = sbr.rel (0) target = $region29
    $region28: #{tpu_custom_call.1} parent=1 // pred_region
      _
    $region29: #{tpu_custom_call.1} parent=1 // pred_fallthru
      _
    // Predicated region
    $region30: #{tpu_custom_call.1} parent=1 // pred_check
      _
    $region31: #{tpu_custom_call.1} parent=1 // pred_check_branch
      %33 = sbr.rel (0) target = $region33
    $region32: #{tpu_custom_call.1} parent=1 // pred_region
      _
    $region33: #{tpu_custom_call.1} parent=1 // pred_fallthru
      _
    // Predicated region
    $region34: #{tpu_custom_call.1} parent=1 // pred_check
      _
    $region35: #{tpu_custom_call.1} parent=1 // pred_check_branch
      %35 = sbr.rel (0) target = $region37
    $region36: #{tpu_custom_call.1} parent=1 // pred_region
      _
    $region37: #{tpu_custom_call.1} parent=1 // pred_fallthru
      _
    // Predicated region
    $region38: #{tpu_custom_call.1} parent=1 // pred_check
      _
    $region39: #{tpu_custom_call.1} parent=1 // pred_check_branch
      %37 = sbr.rel (0) target = $region41
    $region40: #{tpu_custom_call.1} parent=1 // pred_region
      _
    $region41: #{tpu_custom_call.1} parent=1 // pred_fallthru
      _
    %v38 = vld [vmem:[%s0] sm:$0xff]
    %v39 = vld [vmem:[%s1] sm:$0xff]
    %v40 = vld [vmem:[%s1 + $0x8] sm:$0xff]
    %v41 = vld [vmem:[%s2] sm:$0x1]
    %v43 = vlaneseq
    %v44 = vshrl.u32 %v43, 7
    %v45 = vsub.s32 0, %v44
    %v46 = vrot.slane %v41, %v45
    %vm48 = vcmask 130048
    %v50 = vsel %vm48, %v38, 0
    %52 = vmatprep.subr.mxu0 0.0
    %53 = vmatpush1.msra.mxu0 %v39
    %54 = vmatprep.subr.mxu0 0.0
    %55 = vmatpush1.msra.mxu0 %v40
    %56 = vmatprep.subr.mxu0 0.0
    %57 = vmatpush1.msra.mxu0 0.0
    %58 = vmatprep.subr.mxu0 0.0
    %59 = vmatpush1.msra.mxu0 0.0
    %60 = vmatprep.subr.mxu0 0.0
    %61 = vmatpush1.msra.mxu0 0.0
    %62 = vmatprep.subr.mxu0 0.0
    %63 = vmatpush1.msra.mxu0 0.0
    %64 = vmatprep.subr.mxu0 0.0
    %65 = vmatpush1.msra.mxu0 0.0
    %66 = vmatprep.subr.mxu0 0.0
    %67 = vmatpush1.msra.mxu0 0.0
    %68 = vmatprep.subr.mxu0 0.0
    %69 = vmatpush1.msra.mxu0 0.0
    %70 = vmatprep.subr.mxu0 0.0
    %71 = vmatpush1.msra.mxu0 0.0
    %72 = vmatprep.subr.mxu0 0.0
    %73 = vmatpush1.msra.mxu0 0.0
    %74 = vmatprep.subr.mxu0 0.0
    %75 = vmatpush1.msra.mxu0 0.0
    %76 = vmatprep.subr.mxu0 0.0
    %77 = vmatpush1.msra.mxu0 0.0
    %78 = vmatprep.subr.mxu0 0.0
    %79 = vmatpush1.msra.mxu0 0.0
    %80 = vmatprep.subr.mxu0 0.0
    %81 = vmatpush1.msra.mxu0 0.0
    %82 = vmatprep.subr.mxu0 0.0
    %83 = vmatpush1.msra.mxu0 0.0
    %84 = vmatprep.subr.mxu0 0.0
    %85 = vmatpush1.msra.mxu0 0.0
    %86 = vmatprep.subr.mxu0 0.0
    %87 = vmatpush1.msra.mxu0 0.0
    %88 = vmatprep.subr.mxu0 0.0
    %89 = vmatpush1.msra.mxu0 0.0
    %90 = vmatprep.subr.mxu0 0.0
    %91 = vmatpush1.msra.mxu0 0.0
    %92 = vmatprep.subr.mxu0 0.0
    %93 = vmatpush1.msra.mxu0 0.0
    %94 = vmatprep.subr.mxu0 0.0
    %95 = vmatpush1.msra.mxu0 0.0
    %96 = vmatprep.subr.mxu0 0.0
    %97 = vmatpush1.msra.mxu0 0.0
    %98 = vmatprep.subr.mxu0 0.0
    %99 = vmatpush1.msra.mxu0 0.0
    %100 = vmatprep.subr.mxu0 0.0
    %101 = vmatpush1.msra.mxu0 0.0
    %102 = vmatprep.subr.mxu0 0.0
    %103 = vmatpush1.msra.mxu0 0.0
    %104 = vmatprep.subr.mxu0 0.0
    %105 = vmatpush1.msra.mxu0 0.0
    %106 = vmatprep.subr.mxu0 0.0
    %107 = vmatpush1.msra.mxu0 0.0
    %108 = vmatprep.subr.mxu0 0.0
    %109 = vmatpush1.msra.mxu0 0.0
    %110 = vmatprep.subr.mxu0 0.0
    %111 = vmatpush1.msra.mxu0 0.0
    %112 = vmatprep.subr.mxu0 0.0
    %113 = vmatpush1.msra.mxu0 0.0
    %114 = vmatprep.subr.mxu0 0.0
    %115 = vmatpush1.msra.mxu0 0.0
    %116 = vmatprep.mubr.f32.mxu0 0.0
    %117 = vmatmul.mubr.f32.gmra.mrb[0].mxu0 %v50
    %v118 = vpop.f32.mrb[0].mxu0
    %v119 = vadd.f32 %v46, %v118
    %v120 = vpop.f32.mrb[0].mxu0
    %121 = vdwg.mxu0
    %v122 = vmax.f32 %v119, 0.0
    %v123 = vld [vmem:[%s3] sm:$0xff]
    %v124 = vld [vmem:[%s3 + $0x8] sm:$0xff]
    %v125 = vld [vmem:[%s3 + $0x10] sm:$0xff]
    %v126 = vld [vmem:[%s3 + $0x18] sm:$0xff]
    %v127 = vld [vmem:[%s4] sm:$0x1]
    %v129 = vlaneseq
    %v130 = vshrl.u32 %v129, 7
    %v131 = vsub.s32 0, %v130
    %v132 = vrot.slane %v127, %v131
    %vm134 = vcmask 261120
    %v136 = vsel %vm134, %v122, 0
    %138 = vmatprep.subr.mxu0 0.0
    %139 = vmatpush1.msra.mxu0 %v123
    %140 = vmatprep.subr.mxu0 0.0
    %141 = vmatpush1.msra.mxu0 %v124
    %142 = vmatprep.subr.mxu0 0.0
    %143 = vmatpush1.msra.mxu0 %v125
    %144 = vmatprep.subr.mxu0 0.0
    %145 = vmatpush1.msra.mxu0 %v126
    %146 = vmatprep.subr.mxu0 0.0
    %147 = vmatpush1.msra.mxu0 0.0
    %148 = vmatprep.subr.mxu0 0.0
    %149 = vmatpush1.msra.mxu0 0.0
    %150 = vmatprep.subr.mxu0 0.0
    %151 = vmatpush1.msra.mxu0 0.0
    %152 = vmatprep.subr.mxu0 0.0
    %153 = vmatpush1.msra.mxu0 0.0
    %154 = vmatprep.subr.mxu0 0.0
    %155 = vmatpush1.msra.mxu0 0.0
    %156 = vmatprep.subr.mxu0 0.0
    %157 = vmatpush1.msra.mxu0 0.0
    %158 = vmatprep.subr.mxu0 0.0
    %159 = vmatpush1.msra.mxu0 0.0
    %160 = vmatprep.subr.mxu0 0.0
    %161 = vmatpush1.msra.mxu0 0.0
    %162 = vmatprep.subr.mxu0 0.0
    %163 = vmatpush1.msra.mxu0 0.0
    %164 = vmatprep.subr.mxu0 0.0
    %165 = vmatpush1.msra.mxu0 0.0
    %166 = vmatprep.subr.mxu0 0.0
    %167 = vmatpush1.msra.mxu0 0.0
    %168 = vmatprep.subr.mxu0 0.0
    %169 = vmatpush1.msra.mxu0 0.0
    %170 = vmatprep.subr.mxu0 0.0
    %171 = vmatpush1.msra.mxu0 0.0
    %172 = vmatprep.subr.mxu0 0.0
    %173 = vmatpush1.msra.mxu0 0.0
    %174 = vmatprep.subr.mxu0 0.0
    %175 = vmatpush1.msra.mxu0 0.0
    %176 = vmatprep.subr.mxu0 0.0
    %177 = vmatpush1.msra.mxu0 0.0
    %178 = vmatprep.subr.mxu0 0.0
    %179 = vmatpush1.msra.mxu0 0.0
    %180 = vmatprep.subr.mxu0 0.0
    %181 = vmatpush1.msra.mxu0 0.0
    %182 = vmatprep.subr.mxu0 0.0
    %183 = vmatpush1.msra.mxu0 0.0
    %184 = vmatprep.subr.mxu0 0.0
    %185 = vmatpush1.msra.mxu0 0.0
    %186 = vmatprep.subr.mxu0 0.0
    %187 = vmatpush1.msra.mxu0 0.0
    %188 = vmatprep.subr.mxu0 0.0
    %189 = vmatpush1.msra.mxu0 0.0
    %190 = vmatprep.subr.mxu0 0.0
    %191 = vmatpush1.msra.mxu0 0.0
    %192 = vmatprep.subr.mxu0 0.0
    %193 = vmatpush1.msra.mxu0 0.0
    %194 = vmatprep.subr.mxu0 0.0
    %195 = vmatpush1.msra.mxu0 0.0
    %196 = vmatprep.subr.mxu0 0.0
    %197 = vmatpush1.msra.mxu0 0.0
    %198 = vmatprep.subr.mxu0 0.0
    %199 = vmatpush1.msra.mxu0 0.0
    %200 = vmatprep.subr.mxu0 0.0
    %201 = vmatpush1.msra.mxu0 0.0
    %202 = vmatprep.mubr.f32.mxu0 0.0
    %203 = vmatmul.mubr.f32.gmra.mrb[0].mxu0 %v136
    %v204 = vpop.f32.mrb[0].mxu0
    %v205 = vadd.f32 %v132, %v204
    %v206 = vpop.f32.mrb[0].mxu0
    %207 = vdwg.mxu0
    %v208 = vld [vmem:[%s5] sm:$0xff]
    %v209 = vld [vmem:[%s5 + $0x8] sm:$0xff]
    %v210 = vld [vmem:[%s5 + $0x10] sm:$0xff]
    %v211 = vld [vmem:[%s5 + $0x18] sm:$0xff]
    %v212 = vld [vmem:[%s6] sm:$0x1]
    %v214 = vlaneseq
    %v215 = vshrl.u32 %v214, 7
    %v216 = vsub.s32 0, %v215
    %v217 = vrot.slane %v212, %v216
    %219 = vmatprep.subr.mxu0 0.0
    %220 = vmatpush1.msra.mxu0 %v208
    %221 = vmatprep.subr.mxu0 0.0
    %222 = vmatpush1.msra.mxu0 %v209
    %223 = vmatprep.subr.mxu0 0.0
    %224 = vmatpush1.msra.mxu0 %v210
    %225 = vmatprep.subr.mxu0 0.0
    %226 = vmatpush1.msra.mxu0 %v211
    %227 = vmatprep.subr.mxu0 0.0
    %228 = vmatpush1.msra.mxu0 0.0
    %229 = vmatprep.subr.mxu0 0.0
    %230 = vmatpush1.msra.mxu0 0.0
    %231 = vmatprep.subr.mxu0 0.0
    %232 = vmatpush1.msra.mxu0 0.0
    %233 = vmatprep.subr.mxu0 0.0
    %234 = vmatpush1.msra.mxu0 0.0
    %235 = vmatprep.subr.mxu0 0.0
    %236 = vmatpush1.msra.mxu0 0.0
    %237 = vmatprep.subr.mxu0 0.0
    %238 = vmatpush1.msra.mxu0 0.0
    %239 = vmatprep.subr.mxu0 0.0
    %240 = vmatpush1.msra.mxu0 0.0
    %241 = vmatprep.subr.mxu0 0.0
    %242 = vmatpush1.msra.mxu0 0.0
    %243 = vmatprep.subr.mxu0 0.0
    %244 = vmatpush1.msra.mxu0 0.0
    %245 = vmatprep.subr.mxu0 0.0
    %246 = vmatpush1.msra.mxu0 0.0
    %247 = vmatprep.subr.mxu0 0.0
    %248 = vmatpush1.msra.mxu0 0.0
    %249 = vmatprep.subr.mxu0 0.0
    %250 = vmatpush1.msra.mxu0 0.0
    %251 = vmatprep.subr.mxu0 0.0
    %252 = vmatpush1.msra.mxu0 0.0
    %253 = vmatprep.subr.mxu0 0.0
    %254 = vmatpush1.msra.mxu0 0.0
    %255 = vmatprep.subr.mxu0 0.0
    %256 = vmatpush1.msra.mxu0 0.0
    %257 = vmatprep.subr.mxu0 0.0
    %258 = vmatpush1.msra.mxu0 0.0
    %259 = vmatprep.subr.mxu0 0.0
    %260 = vmatpush1.msra.mxu0 0.0
    %261 = vmatprep.subr.mxu0 0.0
    %262 = vmatpush1.msra.mxu0 0.0
    %263 = vmatprep.subr.mxu0 0.0
    %264 = vmatpush1.msra.mxu0 0.0
    %265 = vmatprep.subr.mxu0 0.0
    %266 = vmatpush1.msra.mxu0 0.0
    %267 = vmatprep.subr.mxu0 0.0
    %268 = vmatpush1.msra.mxu0 0.0
    %269 = vmatprep.subr.mxu0 0.0
    %270 = vmatpush1.msra.mxu0 0.0
    %271 = vmatprep.subr.mxu0 0.0
    %272 = vmatpush1.msra.mxu0 0.0
    %273 = vmatprep.subr.mxu0 0.0
    %274 = vmatpush1.msra.mxu0 0.0
    %275 = vmatprep.subr.mxu0 0.0
    %276 = vmatpush1.msra.mxu0 0.0
    %277 = vmatprep.subr.mxu0 0.0
    %278 = vmatpush1.msra.mxu0 0.0
    %279 = vmatprep.subr.mxu0 0.0
    %280 = vmatpush1.msra.mxu0 0.0
    %281 = vmatprep.subr.mxu0 0.0
    %282 = vmatpush1.msra.mxu0 0.0
    %283 = vmatprep.mubr.f32.mxu0 0.0
    %284 = vmatmul.mubr.f32.gmra.mrb[0].mxu0 %v136
    %v285 = vpop.f32.mrb[0].mxu0
    %v286 = vadd.f32 %v217, %v285
    %v287 = vpop.f32.mrb[0].mxu0
    %288 = vdwg.mxu0
    %s289 = sld [smem:[#allocation2]]
    %s290 = sld [smem:[#allocation3]]
    %v291 = vstv %s289
    %v292 = vsub.f32 %v291, %v286
    %v293 = vmax.f32 %v292, 0.0
    %vm294 = vcmp.ne.f32.partialorder %v292, %v292
    %v295 = vadd.f32 %v292, 0.0
    %v296 = vand.u32 2147483647, %v292
    %v297 = vsub.f32 0.0, %v296
    %v298 = vmul.f32 %v297, 1.442695
    %v299 = vpow.pop %v298
    %v300 = vadd.f32 %v299, 1.0
    %v301 = vlog2.pop %v300
    %v302 = vmul.f32 %v301, 0.6931472
    %v303 = vmul.f32 -0.5, %v299
    %v304 = vadd.f32 %v303, 1.0
    %v305 = vmul.f32 %v304, %v299
    %v306 = vand.u32 2147483647, %v299
    %vm307 = vcmp.lt.f32.partialorder %v306, 0.0004427343
    %v308 = vsel %vm307, %v305, %v302
    %v309 = vadd.f32 %v293, %v308
    %v310 = vsel %vm294, %v295, %v309
    %v311 = vsub.f32 %v291, %v310
    %v312 = vstv %s290
    %v313 = vsub.f32 %v311, %v312
    %v314 = vmax.f32 %v313, 0.0
    %vm315 = vcmp.ne.f32.partialorder %v313, %v313
    %v316 = vadd.f32 %v313, 0.0
    %v317 = vand.u32 2147483647, %v313
    %v318 = vsub.f32 0.0, %v317
    %v319 = vmul.f32 %v318, 1.442695
    %v320 = vpow.pop %v319
    %v321 = vadd.f32 %v320, 1.0
    %v322 = vlog2.pop %v321
    %v323 = vmul.f32 %v322, 0.6931472
    %v324 = vmul.f32 -0.5, %v320
    %v325 = vadd.f32 %v324, 1.0
    %v326 = vmul.f32 %v325, %v320
    %v327 = vand.u32 2147483647, %v320
    %vm328 = vcmp.lt.f32.partialorder %v327, 0.0004427343
    %v329 = vsel %vm328, %v326, %v323
    %v330 = vadd.f32 %v314, %v329
    %v331 = vsel %vm315, %v316, %v330
    %v332 = vadd.f32 %v312, %v331
    %v333 = vmul.f32 %v332, 1.442695
    %v334 = vpow.pop %v333
    %v335 = vld [vmem:[%s7] sm:$0x1]
    %v337 = vlaneseq
    %v338 = vshrl.u32 %v337, 7
    %v339 = vsub.s32 0, %v338
    %v340 = vrot.slane %v335, %v339
    %v342 = vmul.f32 %v334, %v340
    %344 = vrot.lane.b32.xlu0 %v342, 4
    %v345 = vpop.permute.xlu0 %344
    %vm347 = vcmask 31744
    %v348 = vsel %vm347, %v205, %v345
    %vm349 = vcmask 64512
    %350 = vst.msk [vmem:[#allocation4] sm:$0xff] %vm349, %v348
    // Predicated region
    $region42: #{tpu_custom_call.1} parent=1 // pred_check
      _
    $region43: #{tpu_custom_call.1} parent=1 // pred_check_branch
      %352 = sbr.rel (0) target = $region45
    $region44: #{tpu_custom_call.1} parent=1 // pred_region
      %s354 = ssub.s32 128, 128
      %355 = vsyncadd [#allocation5], %s354
      %s357 = sshll.u32 [#allocation4], 4
      %s358 = int_to_ptr.vmem [resolvable:$true] %s357
      %360 = dma.vmem_to_hbm [thread:$0]  %s358, 128, %s10, [#allocation5]
    $region45: #{tpu_custom_call.1} parent=1 // pred_fallthru
      _
    // Predicated region
    $region46: #{tpu_custom_call.1} parent=1 // pred_check
      _
    $region47: #{tpu_custom_call.1} parent=1 // pred_check_branch
      %362 = sbr.rel (0) target = $region49
    $region48: #{tpu_custom_call.1} parent=1 // pred_region
      %363 = dma.done [#allocation5], 128
    $region49: #{tpu_custom_call.1} parent=1 // pred_fallthru
      _
    %364 = vsyncpa [#allocation5], 1

</llo_original>
